<compile_context>
chip_gen: v7x
topology: tpu7x:2x2x1
jax: 0.10.0
libtpu: 0.0.40
codegen_flags: <defaults>
</compile_context>

<pallas_src>
import functools
import numpy as np
import jax
import jax.numpy as jnp
from jax import lax
from jax.experimental import pallas as pl
from jax.experimental.pallas import tpu as pltpu


# ----------------------------------------------------------------------------
# Tiling helpers
# ----------------------------------------------------------------------------
def _round_up(x, m):
    return (x + m - 1) // m * m


def _choose_tile_rows(n_rows, bytes_per_row, granule=16, budget_bytes=24 << 20, max_tile=512):
    """Largest row tile (multiple of `granule`) whose double-buffered inputs fit the budget.

    granule=16 keeps the sublane dim legal for bf16 (16,128) packing as well as f32 (8,128).
    budget = 24 MiB covers 2 inputs x 2 pipeline buffers and stays well under v7x's 64 MiB VMEM.
    """
    rows = budget_bytes // max(2 * bytes_per_row, 1)
    rows = max(granule, min(max_tile, rows))
    rows = (rows // granule) * granule
    return max(granule, min(rows, _round_up(max(n_rows, 1), granule)))


def _vmem_limit(tile_rows, bytes_per_row):
    need = 2 * tile_rows * bytes_per_row + (2 << 20)
    return int(min(64 << 20, max(16 << 20, 2 * need)))


# ----------------------------------------------------------------------------
# Pallas kernels (the reduction / elementwise hot paths)
# ----------------------------------------------------------------------------
def _weighted_ce_kernel(logits_ref, tgt_ref, num_ref, den_ref, *,
                        num_classes, eos_coef, focal, alpha, gamma):
    """Per-row softmax cross-entropy -> per-tile partial (numerator, denominator) sums.

    logits_ref: [T, C] (any float dtype), tgt_ref: [T, 1] int32 with -1 marking padded rows.
    Weighted-mean CE (F.cross_entropy w/ class weight) or focal reduction, matching PyTorch.
    """
    x = logits_ref[...].astype(jnp.float32)                         # [T, C]
    t = tgt_ref[...]                                                # [T, 1] int32
    T, C = x.shape

    m = jnp.max(x, axis=-1, keepdims=True)
    lse = m + jnp.log(jnp.sum(jnp.exp(x - m), axis=-1, keepdims=True))
    cls = lax.broadcasted_iota(jnp.int32, (T, C), 1)
    tgt_logit = jnp.sum(jnp.where(cls == t, x, 0.0), axis=-1, keepdims=True)
    ce = lse - tgt_logit                                            # [T, 1]
    valid = (t >= 0).astype(jnp.float32)                            # padded rows contribute 0

    if focal:
        # focal_loss(): alpha * (1 - exp(-ce))**gamma * ce, mean over all (valid) entries.
        pt = jnp.exp(-ce)
        one_m_pt = 1.0 - pt
        g = float(gamma)
        if g == 2.0:
            mod = one_m_pt * one_m_pt        # avoid EUP pow (exp+log) for the common gamma=2
        elif g == 1.0:
            mod = one_m_pt
        else:
            mod = one_m_pt ** g
        f = float(alpha) * mod * ce
        f = jnp.where(t == 255, 0.0, f)      # F.cross_entropy(ignore_index=255) semantics
        num = jnp.sum(f * valid)
        den = jnp.sum(valid)
    else:
        # class-weighted cross_entropy, reduction='mean': sum(w*ce) / sum(w)
        w = jnp.where(t == num_classes, float(eos_coef), 1.0).astype(jnp.float32) * valid
        num = jnp.sum(w * ce)
        den = jnp.sum(w)

    # Lane-dense partial-sum outputs (unmasked full-lane stores).
    num_ref[...] = jnp.broadcast_to(num, num_ref.shape)
    den_ref[...] = jnp.broadcast_to(den, den_ref.shape)


def _mask_loss_kernel(logits_ref, labels_ref, valid_ref, mask_ref, dice_ref, *, inv_points):
    """sigmoid_ce_loss + dice_loss fused, per-tile partial sums (division by num_masks in JAX)."""
    x = logits_ref[...].astype(jnp.float32)                         # [T, P]
    y = labels_ref[...].astype(jnp.float32)                         # [T, P]
    v = valid_ref[...]                                              # [T, 1] f32 {0, 1}

    # One EUP exp reused by both the BCE-with-logits log term and the sigmoid (dice) path.
    z = jnp.exp(-jnp.abs(x))                                        # exp(-|x|) in (0, 1]
    bce = jnp.maximum(x, 0.0) - x * y + jnp.log(1.0 + z)            # stable BCE with logits
    per_row_ce = jnp.sum(bce, axis=-1, keepdims=True) * inv_points  # mean over points
    mask_partial = jnp.sum(per_row_ce * v)

    r = pl.reciprocal(1.0 + z, approx=True)                         # EUP rcp, off the VPU path
    p = jnp.where(x >= 0.0, r, z * r)                               # sigmoid(x) w/o a 2nd exp
    numer = 2.0 * jnp.sum(p * y, axis=-1, keepdims=True)
    denom = jnp.sum(p, axis=-1, keepdims=True) + jnp.sum(y, axis=-1, keepdims=True)
    dice = 1.0 - (numer + 1.0) / (denom + 1.0)
    dice_partial = jnp.sum(dice * v)

    mask_ref[...] = jnp.broadcast_to(mask_partial, mask_ref.shape)
    dice_ref[...] = jnp.broadcast_to(dice_partial, dice_ref.shape)


# ----------------------------------------------------------------------------
# Pallas wrappers
# ----------------------------------------------------------------------------
def weighted_cross_entropy(logits, targets, num_classes, eos_coef, *,
                           focal=False, alpha=10.0, gamma=2.0):
    """logits: [N, C]; targets: [N] int32 in [0, num_classes] (num_classes == no-object)."""
    N, C = logits.shape
    bytes_per_row = C * logits.dtype.itemsize + 4                   # logits + int32 target
    tile = _choose_tile_rows(N, bytes_per_row)
    n_pad = _round_up(N, tile)
    num_tiles = n_pad // tile

    tgt = targets.astype(jnp.int32)
    if n_pad != N:
        logits = jnp.pad(logits, ((0, n_pad - N), (0, 0)))
        tgt = jnp.pad(tgt, (0, n_pad - N), constant_values=-1)      # -1 marks padded rows
    tgt = tgt.reshape(n_pad, 1)

    kern = functools.partial(_weighted_ce_kernel, num_classes=int(num_classes),
                             eos_coef=float(eos_coef), focal=bool(focal),
                             alpha=float(alpha), gamma=float(gamma))
    out_spec = pl.BlockSpec((1, 8, 128), lambda i: (i, 0, 0))
    num_p, den_p = pl.pallas_call(
        kern,
        grid=(num_tiles,),
        in_specs=[pl.BlockSpec((tile, C), lambda i: (i, 0)),
                  pl.BlockSpec((tile, 1), lambda i: (i, 0))],
        out_specs=(out_spec, out_spec),
        out_shape=(jax.ShapeDtypeStruct((num_tiles, 8, 128), jnp.float32),
                   jax.ShapeDtypeStruct((num_tiles, 8, 128), jnp.float32)),
        compiler_params=pltpu.CompilerParams(
            dimension_semantics=("parallel",),
            vmem_limit_bytes=_vmem_limit(tile, bytes_per_row)),
    )(logits, tgt)
    num = jnp.sum(num_p[:, 0, 0])
    den = jnp.sum(den_p[:, 0, 0])
    return num / den


def mask_point_losses(point_logits, point_labels, num_masks):
    """point_logits / point_labels: [N_matched, num_points]. Returns (loss_mask, loss_dice)."""
    N, P = point_logits.shape
    # bf16 at the pallas_call boundary halves HBM->VMEM DMA bytes; math runs in f32 in-kernel.
    logits = point_logits.astype(jnp.bfloat16)
    labels = point_labels.astype(jnp.bfloat16)

    bytes_per_row = P * (logits.dtype.itemsize + labels.dtype.itemsize) + 4
    tile = _choose_tile_rows(N, bytes_per_row)
    n_pad = _round_up(N, tile)
    num_tiles = n_pad // tile

    valid = (jnp.arange(n_pad) < N).astype(jnp.float32).reshape(n_pad, 1)
    if n_pad != N:
        logits = jnp.pad(logits, ((0, n_pad - N), (0, 0)))
        labels = jnp.pad(labels, ((0, n_pad - N), (0, 0)))

    kern = functools.partial(_mask_loss_kernel, inv_points=1.0 / float(P))
    out_spec = pl.BlockSpec((1, 8, 128), lambda i: (i, 0, 0))
    mask_p, dice_p = pl.pallas_call(
        kern,
        grid=(num_tiles,),
        in_specs=[pl.BlockSpec((tile, P), lambda i: (i, 0)),
                  pl.BlockSpec((tile, P), lambda i: (i, 0)),
                  pl.BlockSpec((tile, 1), lambda i: (i, 0))],
        out_specs=(out_spec, out_spec),
        out_shape=(jax.ShapeDtypeStruct((num_tiles, 8, 128), jnp.float32),
                   jax.ShapeDtypeStruct((num_tiles, 8, 128), jnp.float32)),
        compiler_params=pltpu.CompilerParams(
            dimension_semantics=("parallel",),
            vmem_limit_bytes=_vmem_limit(tile, bytes_per_row)),
    )(logits, labels, valid)

    nm = jnp.asarray(num_masks, jnp.float32)
    loss_mask = jnp.sum(mask_p[:, 0, 0]) / nm
    loss_dice = jnp.sum(dice_p[:, 0, 0]) / nm
    return loss_mask, loss_dice


# ----------------------------------------------------------------------------
# Plain-JAX glue (sampling, gathers, matching)
# ----------------------------------------------------------------------------
def calculate_uncertainty(logits):
    return -jnp.abs(logits)


def point_sample(values, point_coords):
    """Bilinear sampling equivalent to F.grid_sample(mode='bilinear', padding_mode='zeros',
    align_corners=False) on normalized [0,1] point coords.
    values: [N, H, W], point_coords: [N, P, 2] with (x, y) ordering."""
    N, H, W = values.shape
    vflat = values.reshape(N, H * W)                                # one contiguous gather/corner
    x = point_coords[..., 0] * W - 0.5
    y = point_coords[..., 1] * H - 0.5
    x0 = jnp.floor(x)
    y0 = jnp.floor(y)

    def gather(xi, yi):
        valid = (xi >= 0) & (xi <= W - 1) & (yi >= 0) & (yi <= H - 1)
        xc = jnp.clip(xi, 0, W - 1).astype(jnp.int32)
        yc = jnp.clip(yi, 0, H - 1).astype(jnp.int32)
        v = jnp.take_along_axis(vflat, yc * W + xc, axis=1)         # flattened batched take
        return v * valid.astype(values.dtype)

    wx1 = x - x0
    wx0 = 1.0 - wx1
    wy1 = y - y0
    wy0 = 1.0 - wy1
    v00 = gather(x0, y0)
    v01 = gather(x0 + 1.0, y0)
    v10 = gather(x0, y0 + 1.0)
    v11 = gather(x0 + 1.0, y0 + 1.0)
    return wy0 * (wx0 * v00 + wx1 * v01) + wy1 * (wx0 * v10 + wx1 * v11)


def get_uncertain_point_coords_with_randomness(key, coarse_logits, num_points,
                                               oversample_ratio, importance_sample_ratio):
    """coarse_logits: [N, Hm, Wm] (class-agnostic, single channel)."""
    N = coarse_logits.shape[0]
    num_sampled = int(num_points * oversample_ratio)
    num_uncertain = int(importance_sample_ratio * num_points)
    num_random = num_points - num_uncertain
    k1, k2 = jax.random.split(key)

    point_coords = jax.random.uniform(k1, (N, num_sampled, 2), dtype=jnp.float32)
    point_logits = point_sample(coarse_logits, point_coords)        # [N, num_sampled]
    uncertainties = calculate_uncertainty(point_logits)             # [N, num_sampled]
    idx = lax.top_k(uncertainties, num_uncertain)[1]                # [N, num_uncertain]
    selected = jnp.take_along_axis(point_coords, idx[..., None], axis=1)  # [N, num_uncertain, 2]
    if num_random > 0:
        rnd = jax.random.uniform(k2, (N, num_random, 2), dtype=jnp.float32)
        selected = jnp.concatenate([selected, rnd], axis=1)
    return selected


def identity_matcher(outputs, targets):
    # TODO(synk): Hungarian assignment (scipy.optimize.linear_sum_assignment) has no
    # Pallas/JAX equivalent here; use deterministic identity matching (pred j <-> target j).
    return [(np.arange(len(t['labels'])), np.arange(len(t['labels']))) for t in targets]


# ----------------------------------------------------------------------------
# SetCriterion (JAX / Pallas version)
# ----------------------------------------------------------------------------
class SetCriterion:
    def __init__(self, num_classes, matcher, weight_dict, eos_coef, losses,
                 num_points, oversample_ratio, importance_sample_ratio,
                 focal=False, focal_gamma=2, focal_alpha=10):
        self.num_classes = num_classes
        self.matcher = matcher
        self.weight_dict = weight_dict
        self.eos_coef = eos_coef
        self.losses = losses
        self.num_points = num_points
        self.oversample_ratio = oversample_ratio
        self.importance_sample_ratio = importance_sample_ratio
        self.focal = focal
        self.focal_gamma = focal_gamma
        self.focal_alpha = focal_alpha
        # Buffer kept for parity with register_buffer('empty_weight', ...); the CE kernel
        # recomputes the per-sample weight from eos_coef in-kernel (no [N,C]/[N,1] slabs).
        self.empty_weight = jnp.ones(num_classes + 1, jnp.float32).at[-1].set(float(eos_coef))

    @staticmethod
    def _get_src_permutation_idx(indices):
        batch_idx = np.concatenate([np.full_like(src, i) for i, (src, _) in enumerate(indices)])
        src_idx = np.concatenate([src for src, _ in indices])
        return batch_idx, src_idx

    @staticmethod
    def _get_tgt_permutation_idx(indices):
        batch_idx = np.concatenate([np.full_like(tgt, i) for i, (_, tgt) in enumerate(indices)])
        tgt_idx = np.concatenate([tgt for _, tgt in indices])
        return batch_idx, tgt_idx

    def loss_labels(self, outputs, targets, indices, num_masks):
        src_logits = outputs['pred_logits'].astype(jnp.float32)     # [B, Q, C+1] (.float() in ref)
        B, Q, C = src_logits.shape
        batch_idx, src_idx = self._get_src_permutation_idx(indices)
        target_classes_o = jnp.concatenate(
            [t['labels'][J] for t, (_, J) in zip(targets, indices)]).astype(jnp.int32)
        target_classes = jnp.full((B, Q), self.num_classes, dtype=jnp.int32)
        target_classes = target_classes.at[batch_idx, src_idx].set(target_classes_o)

        loss_ce = weighted_cross_entropy(
            src_logits.reshape(B * Q, C), target_classes.reshape(B * Q),
            self.num_classes, self.eos_coef, focal=self.focal,
            alpha=self.focal_alpha, gamma=self.focal_gamma)
        return {'loss_ce': loss_ce}

    def loss_masks(self, outputs, targets, indices, num_masks, key):
        src_b, src_q = self._get_src_permutation_idx(indices)
        tgt_b, tgt_j = self._get_tgt_permutation_idx(indices)

        src_masks = outputs['pred_masks'][src_b, src_q]              # [Nm, Hm, Wm]

        # nested_tensor_from_tensor_list: pad target masks to [B, Tmax, H, W]
        masks = [t['masks'] for t in targets]
        Tmax = max(int(m.shape[0]) for m in masks)
        H, W = masks[0].shape[-2:]
        padded = jnp.zeros((len(masks), Tmax, H, W), jnp.float32)
        for i, m in enumerate(masks):
            padded = padded.at[i, :m.shape[0]].set(m.astype(jnp.float32))
        target_masks = padded[tgt_b, tgt_j]                          # [Nm, H, W]

        # (torch.no_grad block) — uncertainty-driven point sampling, plain JAX
        point_coords = get_uncertain_point_coords_with_randomness(
            key, src_masks, self.num_points, self.oversample_ratio,
            self.importance_sample_ratio)                            # [Nm, P, 2]
        point_labels = point_sample(target_masks, point_coords)      # [Nm, P]
        point_logits = point_sample(src_masks, point_coords)         # [Nm, P]

        loss_mask, loss_dice = mask_point_losses(point_logits, point_labels, num_masks)
        return {'loss_mask': loss_mask, 'loss_dice': loss_dice}

    def get_loss(self, loss, outputs, targets, indices, num_masks, key):
        if loss == 'labels':
            return self.loss_labels(outputs, targets, indices, num_masks)
        if loss == 'masks':
            return self.loss_masks(outputs, targets, indices, num_masks, key)
        raise ValueError(f'do you really want to compute {loss} loss?')

    def forward(self, outputs, targets, key):
        outputs_without_aux = {k: v for k, v in outputs.items() if 'pred' in k}
        indices = self.matcher(outputs_without_aux, targets)
        num_masks = sum(len(t['labels']) for t in targets)
        # TODO(synk): distributed all_reduce / get_world_size omitted (single host).
        num_masks = max(float(num_masks), 1.0)

        losses = {}
        for loss in self.losses:
            losses.update(self.get_loss(loss, outputs, targets, indices, num_masks, key))

        if 'aux_outputs' in outputs:
            for i, aux_outputs in enumerate(outputs['aux_outputs']):
                aux_indices = self.matcher(aux_outputs, targets)
                for loss in self.losses:
                    l_dict = self.get_loss(loss, aux_outputs, targets, aux_indices, num_masks, key)
                    losses.update({k + f'_{i}': v for k, v in l_dict.items()})
        return losses


# ----------------------------------------------------------------------------
# Example run
# ----------------------------------------------------------------------------
if __name__ == "__main__":
    key = jax.random.PRNGKey(0)
    B, Q, num_classes = 2, 8, 4
    Hm = Wm = 8          # predicted mask resolution
    H = W = 16           # target mask resolution

    ks = jax.random.split(key, 8)
    pred_logits = jax.random.normal(ks[0], (B, Q, num_classes + 1), jnp.float32)
    pred_masks = jax.random.normal(ks[1], (B, Q, Hm, Wm), jnp.float32)

    n_targets = [3, 2]
    targets = []
    for i, nt in enumerate(n_targets):
        labels = jax.random.randint(ks[2 + i], (nt,), 0, num_classes)
        masks = (jax.random.uniform(ks[4 + i], (nt, H, W)) > 0.5).astype(jnp.float32)
        targets.append({'labels': labels, 'masks': masks})

    criterion = SetCriterion(
        num_classes=num_classes,
        matcher=identity_matcher,
        weight_dict={'loss_ce': 1.0, 'loss_mask': 1.0, 'loss_dice': 1.0},
        eos_coef=0.1,
        losses=['labels', 'masks'],
        num_points=16,
        oversample_ratio=3,
        importance_sample_ratio=0.75,
        focal=False,
    )

    outputs = {'pred_logits': pred_logits, 'pred_masks': pred_masks}
    losses = criterion.forward(outputs, targets, jax.random.PRNGKey(42))
    losses = {k: jax.block_until_ready(v) for k, v in losses.items()}

    for k_, v_ in losses.items():
        assert jnp.isfinite(v_), k_
    print("KERNEL_OK")
</pallas_src>

<mosaic_0001>
module attributes {stable_mosaic.version = 11 : i64} {
  func.func @_weighted_ce_kernel(%arg0: i32, %arg1: memref<16x5xf32, #tpu.memory_space<vmem>>, %arg2: memref<16x1xi32, #tpu.memory_space<vmem>>, %arg3: memref<1x8x128xf32, #tpu.memory_space<vmem>>, %arg4: memref<1x8x128xf32, #tpu.memory_space<vmem>>) attributes {dimension_semantics = [#tpu.dimension_semantics<parallel>], iteration_bounds = array<i64: 1>, scalar_prefetch = 0 : i64, scratch_operands = 0 : i64, tpu.core_type = #tpu.core_type<tc>, window_params = [{transform_indices = @transform_0, window_bounds = array<i64: 16, 5>}, {transform_indices = @transform_1, window_bounds = array<i64: 16, 1>}, {transform_indices = @transform_2, window_bounds = array<i64: 1, 8, 128>}, {transform_indices = @transform_3, window_bounds = array<i64: 1, 8, 128>}]} {
    %c0 = arith.constant 0 : index
    %c0_0 = arith.constant 0 : index
    %0 = vector.load %arg1[%c0, %c0_0] : memref<16x5xf32, #tpu.memory_space<vmem>>, vector<16x5xf32>
    %c0_1 = arith.constant 0 : index
    %c0_2 = arith.constant 0 : index
    %1 = vector.load %arg2[%c0_1, %c0_2] : memref<16x1xi32, #tpu.memory_space<vmem>>, vector<16x1xi32>
    %cst = arith.constant dense<0xFF800000> : vector<16xf32>
    %2 = vector.multi_reduction <maximumf>, %0, %cst [1] : vector<16x5xf32> to vector<16xf32>
    %3 = vector.shape_cast %2 : vector<16xf32> to vector<16x1xf32>
    %4 = vector.broadcast %3 : vector<16x1xf32> to vector<16x5xf32>
    %5 = arith.subf %0, %4 : vector<16x5xf32>
    %6 = math.exp %5 : vector<16x5xf32>
    %cst_3 = arith.constant dense<0.000000e+00> : vector<16xf32>
    %7 = vector.multi_reduction <add>, %6, %cst_3 [1] : vector<16x5xf32> to vector<16xf32>
    %8 = vector.shape_cast %7 : vector<16xf32> to vector<16x1xf32>
    %9 = math.log %8 : vector<16x1xf32>
    %10 = arith.addf %3, %9 : vector<16x1xf32>
    %11 = tpu.iota {dimensions = array<i32: 1>} : vector<16x5xi32>
    %12 = vector.broadcast %1 : vector<16x1xi32> to vector<16x5xi32>
    %13 = arith.cmpi eq, %11, %12 : vector<16x5xi32>
    %cst_4 = arith.constant 0.000000e+00 : f32
    %14 = vector.broadcast %cst_4 : f32 to vector<16x5xf32>
    %15 = arith.select %13, %0, %14 : vector<16x5xi1>, vector<16x5xf32>
    %cst_5 = arith.constant dense<0.000000e+00> : vector<16xf32>
    %16 = vector.multi_reduction <add>, %15, %cst_5 [1] : vector<16x5xf32> to vector<16xf32>
    %17 = vector.shape_cast %16 : vector<16xf32> to vector<16x1xf32>
    %18 = arith.subf %10, %17 : vector<16x1xf32>
    %c0_i32 = arith.constant 0 : i32
    %19 = vector.broadcast %c0_i32 : i32 to vector<16x1xi32>
    %20 = arith.cmpi sge, %1, %19 : vector<16x1xi32>
    %21 = arith.extui %20 : vector<16x1xi1> to vector<16x1xi32>
    %22 = arith.sitofp %21 : vector<16x1xi32> to vector<16x1xf32>
    %c4_i32 = arith.constant 4 : i32
    %23 = vector.broadcast %c4_i32 : i32 to vector<16x1xi32>
    %24 = arith.cmpi eq, %1, %23 : vector<16x1xi32>
    %cst_6 = arith.constant 1.000000e-01 : f32
    %cst_7 = arith.constant 1.000000e+00 : f32
    %25 = vector.broadcast %cst_6 : f32 to vector<16x1xf32>
    %26 = vector.broadcast %cst_7 : f32 to vector<16x1xf32>
    %27 = arith.select %24, %25, %26 : vector<16x1xi1>, vector<16x1xf32>
    %28 = arith.mulf %27, %22 : vector<16x1xf32>
    %29 = arith.mulf %28, %18 : vector<16x1xf32>
    %30 = vector.shape_cast %29 : vector<16x1xf32> to vector<1x16x1xf32>
    %cst_8 = arith.constant dense<0.000000e+00> : vector<1xf32>
    %31 = vector.multi_reduction <add>, %30, %cst_8 [1, 2] : vector<1x16x1xf32> to vector<1xf32>
    %32 = vector.shape_cast %31 : vector<1xf32> to vector<1x1x1xf32>
    %33 = vector.extract %32[0, 0, 0] : f32 from vector<1x1x1xf32>
    %34 = vector.shape_cast %28 : vector<16x1xf32> to vector<1x16x1xf32>
    %cst_9 = arith.constant dense<0.000000e+00> : vector<1xf32>
    %35 = vector.multi_reduction <add>, %34, %cst_9 [1, 2] : vector<1x16x1xf32> to vector<1xf32>
    %36 = vector.shape_cast %35 : vector<1xf32> to vector<1x1x1xf32>
    %37 = vector.extract %36[0, 0, 0] : f32 from vector<1x1x1xf32>
    %38 = vector.broadcast %33 : f32 to vector<1x8x128xf32>
    %c0_10 = arith.constant 0 : index
    %c0_11 = arith.constant 0 : index
    %c0_12 = arith.constant 0 : index
    %39 = vector.load %arg3[%c0_10, %c0_11, %c0_12] : memref<1x8x128xf32, #tpu.memory_space<vmem>>, vector<1x8x128xf32>
    tpu.vector_store %arg3[%c0_10, %c0_11, %c0_12], %38 {strides = array<i32>} : memref<1x8x128xf32, #tpu.memory_space<vmem>>, vector<1x8x128xf32>,
    %40 = vector.broadcast %37 : f32 to vector<1x8x128xf32>
    %c0_13 = arith.constant 0 : index
    %c0_14 = arith.constant 0 : index
    %c0_15 = arith.constant 0 : index
    %41 = vector.load %arg4[%c0_13, %c0_14, %c0_15] : memref<1x8x128xf32, #tpu.memory_space<vmem>>, vector<1x8x128xf32>
    tpu.vector_store %arg4[%c0_13, %c0_14, %c0_15], %40 {strides = array<i32>} : memref<1x8x128xf32, #tpu.memory_space<vmem>>, vector<1x8x128xf32>,
    return
  }
  func.func @transform_0(%arg0: i32) -> (i32, i32) {
    %c0_i32 = arith.constant 0 : i32
    %c0_i32_0 = arith.constant 0 : i32
    return %arg0, %c0_i32 : i32, i32
  }
  func.func @transform_1(%arg0: i32) -> (i32, i32) {
    %c0_i32 = arith.constant 0 : i32
    %c0_i32_0 = arith.constant 0 : i32
    return %arg0, %c0_i32 : i32, i32
  }
  func.func @transform_2(%arg0: i32) -> (i32, i32, i32) {
    %c0_i32 = arith.constant 0 : i32
    %c0_i32_0 = arith.constant 0 : i32
    %c0_i32_1 = arith.constant 0 : i32
    return %arg0, %c0_i32, %c0_i32_0 : i32, i32, i32
  }
  func.func @transform_3(%arg0: i32) -> (i32, i32, i32) {
    %c0_i32 = arith.constant 0 : i32
    %c0_i32_0 = arith.constant 0 : i32
    %c0_i32_1 = arith.constant 0 : i32
    return %arg0, %c0_i32, %c0_i32_0 : i32, i32, i32
  }
}

</mosaic_0001>

<llo_original>
// kernel: tpu_custom_call.1
$region0: #{tpu_custom_call.1}
  #allocation0 [shape = 'u32[]', space=smem, size = 0x4, offset = 0x4, fixed_abs, tag = 'smem constant byte address 0x4 - core index']
  #allocation1 [shape = 'u32[144,128]{1,0:T(1,128)}', space=vmem, size = 0x12000, scoped, tag = 'internal scratch']
  %s0 = inlined_call_operand.vmem [shape: f32[16,5], index: 0, kind: input, shape index: {}]
  %s1 = inlined_call_operand.vmem [shape: s32[16,1], index: 1, kind: input, shape index: {}]
  %s2 = inlined_call_operand.hbm [shape: f32[1,8,128], index: 2, kind: output, shape index: {0}]
  %s3 = inlined_call_operand.hbm [shape: f32[1,8,128], index: 3, kind: output, shape index: {1}]
  %4 = xla_tuple %s2, %s3
  %s5 = sld [smem:[#allocation0]]
  $region26: #{tpu_custom_call.1} parent=0
    _
  %s7 = ssub.s32 1, %s5
  %s8 = scalar_select 0, %s7, %s5
  $region1: #{tpu_custom_call.1} parent=0
    #allocation2 [shape = 'u8[4096]{0}', space=vmem, size = 0x1000, scoped, tag = 'output window, operand 0, single buffered']
    #allocation3 [shape = 's32[1]{0}', space=sflag, size = 0x4, scoped, tag = 'scoped memory for tpu_custom_call.1']
    #allocation4 [shape = 'u8[4096]{0}', space=vmem, size = 0x1000, scoped, tag = 'output window, operand 1, single buffered']
    #allocation5 [shape = 's32[1]{0}', space=sflag, size = 0x4, scoped, tag = 'scoped memory for tpu_custom_call.1']
    %9 = vsyncpa [#allocation3], 0
    %10 = vsyncpa [#allocation5], 0
    // Predicated region
    $region2: #{tpu_custom_call.1} parent=1 // pred_check
      _
    $region3: #{tpu_custom_call.1} parent=1 // pred_check_branch
      %12 = sbr.rel (0) target = $region5
    $region4: #{tpu_custom_call.1} parent=1 // pred_region
      _
    $region5: #{tpu_custom_call.1} parent=1 // pred_fallthru
      _
    // Predicated region
    $region6: #{tpu_custom_call.1} parent=1 // pred_check
      _
    $region7: #{tpu_custom_call.1} parent=1 // pred_check_branch
      %14 = sbr.rel (0) target = $region9
    $region8: #{tpu_custom_call.1} parent=1 // pred_region
      _
    $region9: #{tpu_custom_call.1} parent=1 // pred_fallthru
      _
    %v15 = vld [vmem:[%s0] sm:$0xff]
    %v16 = vld [vmem:[%s0 + $0x8] sm:$0xff]
    %v17 = vld [vmem:[%s1] sm:$0xff]
    %v18 = vld [vmem:[%s1 + $0x8] sm:$0xff]
    %vm19 = vcmask 39936
    %v20 = vsel %vm19, %v15, -inf
    %21 = vmax.xlane.f32.xlu0 %v20
    %v22 = vpop.xlane.xlu0 %21
    %v23 = vsel %vm19, %v16, -inf
    %24 = vmax.xlane.f32.xlu0 %v23
    %v25 = vpop.xlane.xlu0 %24
    %v26 = vsub.f32 %v15, %v22
    %v27 = vsub.f32 %v16, %v25
    %v28 = vmul.f32 %v26, 1.442695
    %v29 = vpow.pop %v28
    %v30 = vmul.f32 %v27, 1.442695
    %v31 = vpow.pop %v30
    %v32 = vsel %vm19, %v29, 0.0
    %33 = vadd.xlane.f32.xlu0 %v32
    %v34 = vpop.xlane.xlu0 %33
    %v35 = vsel %vm19, %v31, 0.0
    %36 = vadd.xlane.f32.xlu0 %v35
    %v37 = vpop.xlane.xlu0 %36
    %v38 = vlog2.pop %v34
    %v39 = vmul.f32 %v38, 0.6931472
    %v40 = vlog2.pop %v37
    %v41 = vmul.f32 %v40, 0.6931472
    %v42 = vadd.f32 %v22, %v39
    %v43 = vadd.f32 %v25, %v41
    %v44 = vlaneseq
    %v45 = vand.u32 %v44, 127
    %46 = vset.pattern.permute.xlu0 0
    %47 = vperm.xlu0 %46, %v17
    %v48 = vpop.permute.xlu0 %47
    %49 = vset.pattern.permute.xlu0 0
    %50 = vperm.xlu0 %49, %v18
    %v51 = vpop.permute.xlu0 %50
    %vm52 = vcmp.eq.s32.totalorder %v45, %v48
    %vm53 = vcmp.eq.s32.totalorder %v45, %v51
    %v54 = vsel %vm52, %v15, 0.0
    %v55 = vsel %vm53, %v16, 0.0
    %v56 = vsel %vm19, %v54, 0.0
    %57 = vadd.xlane.f32.xlu0 %v56
    %v58 = vpop.xlane.xlu0 %57
    %v59 = vsel %vm19, %v55, 0.0
    %60 = vadd.xlane.f32.xlu0 %v59
    %v61 = vpop.xlane.xlu0 %60
    %v62 = vsub.f32 %v42, %v58
    %v63 = vsub.f32 %v43, %v61
    %vm64 = vcmp.ge.s32.totalorder %v17, 0
    %vm65 = vcmp.ge.s32.totalorder %v18, 0
    %v66 = vsel %vm64, 1, 0
    %v67 = vsel %vm65, 1, 0
    %v68 = vcvt.s32.f32 %v66
    %v69 = vcvt.s32.f32 %v67
    %vm70 = vcmp.eq.s32.totalorder %v17, 4
    %vm71 = vcmp.eq.s32.totalorder %v18, 4
    %v72 = vsel %vm70, 0.1, 1.0
    %v73 = vsel %vm71, 0.1, 1.0
    %v74 = vmul.f32 %v72, %v68
    %v75 = vmul.f32 %v73, %v69
    %v76 = vmul.f32 %v74, %v62
    %v77 = vmul.f32 %v75, %v63
    %vm78 = vcmask 7168
    %v79 = vsel %vm78, %v76, 0.0
    %v80 = vsel %vm78, %v77, 0.0
    %v81 = vadd.f32 %v79, %v80
    %82 = vadd.xlane.f32.xlu0 %v81
    %v83 = vpop.xlane.xlu0 %82
    %v84 = vrot.slane %v83, 4
    %v85 = vadd.f32 %v83, %v84
    %v86 = vrot.slane %v85, 2
    %v87 = vadd.f32 %v85, %v86
    %v88 = vrot.slane %v87, 1
    %v89 = vadd.f32 %v87, %v88
    %s90 = vtos %v89
    %v91 = vsel %vm78, %v74, 0.0
    %v92 = vsel %vm78, %v75, 0.0
    %v93 = vadd.f32 %v91, %v92
    %94 = vadd.xlane.f32.xlu0 %v93
    %v95 = vpop.xlane.xlu0 %94
    %v96 = vrot.slane %v95, 4
    %v97 = vadd.f32 %v95, %v96
    %v98 = vrot.slane %v97, 2
    %v99 = vadd.f32 %v97, %v98
    %v100 = vrot.slane %v99, 1
    %v101 = vadd.f32 %v99, %v100
    %s102 = vtos %v101
    %v103 = vstv %s90
    %104 = vst [vmem:[#allocation2] sm:$0xff] %v103
    %v105 = vstv %s102
    %106 = vst [vmem:[#allocation4] sm:$0xff] %v105
    // Predicated region
    $region10: #{tpu_custom_call.1} parent=1 // pred_check
      _
    $region11: #{tpu_custom_call.1} parent=1 // pred_check_branch
      %108 = sbr.rel (0) target = $region13
    $region12: #{tpu_custom_call.1} parent=1 // pred_region
      %s110 = ssub.s32 128, 128
      %111 = vsyncadd [#allocation3], %s110
      %s113 = sshll.u32 [#allocation2], 4
      %s114 = int_to_ptr.vmem [resolvable:$true] %s113
      %116 = dma.vmem_to_hbm [thread:$0]  %s114, 128, %s2, [#allocation3]
    $region13: #{tpu_custom_call.1} parent=1 // pred_fallthru
      _
    // Predicated region
    $region14: #{tpu_custom_call.1} parent=1 // pred_check
      _
    $region15: #{tpu_custom_call.1} parent=1 // pred_check_branch
      %118 = sbr.rel (0) target = $region17
    $region16: #{tpu_custom_call.1} parent=1 // pred_region
      %s120 = ssub.s32 128, 128
      %121 = vsyncadd [#allocation5], %s120
      %s123 = sshll.u32 [#allocation4], 4
      %s124 = int_to_ptr.vmem [resolvable:$true] %s123
      %126 = dma.vmem_to_hbm [thread:$0]  %s124, 128, %s3, [#allocation5]
    $region17: #{tpu_custom_call.1} parent=1 // pred_fallthru
      _
    // Predicated region
    $region18: #{tpu_custom_call.1} parent=1 // pred_check
      _
    $region19: #{tpu_custom_call.1} parent=1 // pred_check_branch
      %128 = sbr.rel (0) target = $region21
    $region20: #{tpu_custom_call.1} parent=1 // pred_region
      %129 = dma.done [#allocation3], 128
    $region21: #{tpu_custom_call.1} parent=1 // pred_fallthru
      _
    // Predicated region
    $region22: #{tpu_custom_call.1} parent=1 // pred_check
      _
    $region23: #{tpu_custom_call.1} parent=1 // pred_check_branch
      %131 = sbr.rel (0) target = $region25
    $region24: #{tpu_custom_call.1} parent=1 // pred_region
      %132 = dma.done [#allocation5], 128
    $region25: #{tpu_custom_call.1} parent=1 // pred_fallthru
      _
    %133 = vsyncpa [#allocation3], 1
    %134 = vsyncpa [#allocation5], 1

</llo_original>
